<compile_context>
chip_gen: v5e
topology: v5e:2x2
jax: 0.10.0
libtpu: 0.0.40
codegen_flags: <defaults>
</compile_context>

<pallas_src>
import functools

import jax
import jax.numpy as jnp
from jax.experimental import pallas as pl
from jax.experimental.pallas import tpu as pltpu

_LANE = 128      # TPU vreg lane width
_MXU_M = 256     # row granularity of one MXU pass on v6e/v7x (128 on v5e is covered too)


def _round_up(x, m):
    return (x + m - 1) // m * m


def _vmem_capacity_bytes():
    """Generation-aware physical VMEM (128 MiB v5e/v6e, 64 MiB per-TC v7x)."""
    try:
        return int(pltpu.get_tpu_info().vmem_capacity_bytes)
    except Exception:
        return 64 * 1024 * 1024   # conservative fallback


_VMEM_CAPACITY = _vmem_capacity_bytes()
# Keep headroom below physical: ~96 MiB on 128-MiB parts, ~48 MiB on v7x.
_VMEM_LIMIT = min(_VMEM_CAPACITY * 3 // 4, 100 * 1024 * 1024)


def _pick_tile_m(m_total, k_p, cout_p):
    """Largest multiple of 256 rows whose pipelined working set fits the budget."""
    budget = max(_VMEM_LIMIT // 3, 4 * 1024 * 1024)
    m_cap = min(_round_up(m_total, _MXU_M), 4096)
    best = _MXU_M
    tm = _MXU_M
    while tm <= m_cap:
        working_set = (2 * tm * k_p * 2          # double-buffered bf16 patch block
                       + 2 * tm * cout_p * 2     # double-buffered bf16 conv-out block
                       + tm * cout_p * 4         # f32 matmul accumulator
                       + 2 * k_p * cout_p * 2)   # (double-buffered) bf16 weights
        if working_set <= budget:
            best = tm
        tm += _MXU_M
    return best


# ---------------------------------------------------------------------------
# Pass 1: conv as one MXU matmul over im2col rows + per-tile partial stats
# ---------------------------------------------------------------------------
def _conv_stats_kernel(p_ref, w_ref, conv_ref, stats_ref):
    """
    p_ref     : (TILE_M, K_p)    bf16 im2col patch rows (one row per output pixel)
    w_ref     : (K_p, Cout_p)    bf16 reshaped conv weights
    conv_ref  : (TILE_M, Cout_p) bf16 conv output tile
    stats_ref : (2, Cout_p)      f32 per-tile partial [sum ; sum of squares]
    """
    acc = jnp.dot(p_ref[...], w_ref[...], preferred_element_type=jnp.float32)
    conv_ref[...] = acc.astype(conv_ref.dtype)
    s = jnp.sum(acc, axis=0, keepdims=True)
    s2 = jnp.sum(acc * acc, axis=0, keepdims=True)
    # TODO(synk): for very large H*W, E[x^2]-E[x]^2 built from these f32 sums can
    #             cancel; a mean-shifted / Welford-style merge would be more robust.
    stats_ref[...] = jnp.concatenate([s, s2], axis=0)


# ---------------------------------------------------------------------------
# Pass 2: instance-norm (folded to per-channel scale/shift) + LeakyReLU
# ---------------------------------------------------------------------------
def _norm_act_kernel(conv_ref, scale_ref, shift_ref, o_ref, *, neg_slope):
    """
    conv_ref  : (TILE_M, Cout_p) bf16 conv tile
    scale_ref : (1, Cout_p)      f32 gamma * rsqrt(var + eps)   (per instance)
    shift_ref : (1, Cout_p)      f32 beta - mean * scale        (per instance)
    o_ref     : (TILE_M, Cout_p) normalized + LeakyReLU output tile
    """
    y = conv_ref[...].astype(jnp.float32) * scale_ref[...] + shift_ref[...]
    o_ref[...] = jnp.where(y > 0.0, y, neg_slope * y).astype(o_ref.dtype)


# ---------------------------------------------------------------------------
# ConvDropoutNormReLU.forward
# ---------------------------------------------------------------------------
def conv_dropout_norm_relu(x_nchw, w_hwio, b, gamma, beta, *,
                           eps=1e-5, neg_slope=1e-2, tile_m=None):
    """Conv2d (stride 1, 'same' padding) -> Identity dropout ->
    InstanceNorm2d(affine) -> LeakyReLU.

    x_nchw : (N, Cin, H, W) PyTorch layout at the interface.
    w_hwio : (KH, KW, Cin, Cout) conv weights. b: (Cout,) conv bias.
    gamma, beta : (Cout,) InstanceNorm affine parameters.
    """
    # Conv bias cancels exactly under InstanceNorm (mean shifts by b, variance
    # unchanged), so it is dropped for free VPU/DMA savings.
    del b
    N, Cin, H, W = x_nchw.shape
    KH, KW, wcin, Cout = w_hwio.shape
    assert wcin == Cin, (wcin, Cin)
    assert KH % 2 == 1 and KW % 2 == 1, "even kernel sizes not supported"
    out_dtype = x_nchw.dtype
    out_itemsize = x_nchw.dtype.itemsize
    ph, pw = (KH - 1) // 2, (KW - 1) // 2

    # ---- wrapper-side im2col with REAL Cin; pad the contraction dim once ----
    # TODO(synk): for Cin >= ~128 this multiplies input HBM reads by KH*KW; an
    #             in-kernel halo im2col over a pl.ANY ref would be preferable there.
    x = jnp.transpose(x_nchw, (0, 2, 3, 1)).astype(jnp.bfloat16)          # NHWC
    xpad = jnp.pad(x, ((0, 0), (ph, ph), (pw, pw), (0, 0)))
    cols = [xpad[:, ky:ky + H, kx:kx + W, :]
            for ky in range(KH) for kx in range(KW)]
    K = KH * KW * Cin
    patches = jnp.concatenate(cols, axis=-1).reshape(N, H * W, K)

    K_p = _round_up(K, _LANE)
    Cout_p = _round_up(Cout, _LANE)
    M = H * W
    tm = tile_m if tile_m is not None else _pick_tile_m(M, K_p, Cout_p)
    M_p = _round_up(M, tm)            # no "tile must divide H" constraint
    nt = M_p // tm

    # Zero-padded rows/columns contribute exactly 0 to conv output and stats
    # (the bias was dropped), so padding is harmless and sliced off at the end.
    patches = jnp.pad(patches, ((0, 0), (0, M_p - M), (0, K_p - K)))
    w2 = jnp.pad(w_hwio.astype(jnp.float32).reshape(K, Cout),
                 ((0, K_p - K), (0, Cout_p - Cout))).astype(jnp.bfloat16)

    # ---- pass 1: conv matmul (MXU, f32 accumulate) + per-tile partial stats ----
    cost1 = pl.CostEstimate(
        flops=2 * N * M_p * K_p * Cout_p,
        transcendentals=0,
        bytes_accessed=(N * M_p * K_p * 2 + K_p * Cout_p * 2
                        + N * M_p * Cout_p * 2 + N * nt * 2 * Cout_p * 4))
    conv_out, part_stats = pl.pallas_call(
        _conv_stats_kernel,
        grid=(N, nt),
        in_specs=[
            pl.BlockSpec((None, tm, K_p), lambda n, t: (n, t, 0)),
            pl.BlockSpec((K_p, Cout_p), lambda n, t: (0, 0)),
        ],
        out_specs=[
            pl.BlockSpec((None, tm, Cout_p), lambda n, t: (n, t, 0)),
            pl.BlockSpec((None, None, 2, Cout_p), lambda n, t: (n, t, 0, 0)),
        ],
        out_shape=[
            jax.ShapeDtypeStruct((N, M_p, Cout_p), jnp.bfloat16),
            jax.ShapeDtypeStruct((N, nt, 2, Cout_p), jnp.float32),
        ],
        compiler_params=pltpu.CompilerParams(
            dimension_semantics=("parallel", "parallel"),
            vmem_limit_bytes=_VMEM_LIMIT),
        cost_estimate=cost1,
    )(patches, w2)

    # ---- tiny per-instance reductions / affine folding (XLA, N x Cout_p) ----
    stats = jnp.sum(part_stats, axis=1)                       # (N, 2, Cout_p) f32
    inv_hw = 1.0 / float(M)
    mean = stats[:, 0, :] * inv_hw
    var = jnp.maximum(stats[:, 1, :] * inv_hw - mean * mean, 0.0)   # biased var
    g = jnp.pad(gamma.astype(jnp.float32), (0, Cout_p - Cout))
    bt = jnp.pad(beta.astype(jnp.float32), (0, Cout_p - Cout))
    scale = jax.lax.rsqrt(var + eps) * g[None, :]              # (N, Cout_p)
    shift = bt[None, :] - mean * scale
    scale = scale[:, None, :]                                  # (N, 1, Cout_p)
    shift = shift[:, None, :]

    # ---- pass 2: instance-norm (scale/shift) + LeakyReLU ----
    cost2 = pl.CostEstimate(
        flops=3 * N * M_p * Cout_p,
        transcendentals=0,
        bytes_accessed=N * M_p * Cout_p * (2 + out_itemsize) + 2 * N * Cout_p * 4)
    y = pl.pallas_call(
        functools.partial(_norm_act_kernel, neg_slope=neg_slope),
        grid=(N, nt),
        in_specs=[
            pl.BlockSpec((None, tm, Cout_p), lambda n, t: (n, t, 0)),
            pl.BlockSpec((None, 1, Cout_p), lambda n, t: (n, 0, 0)),
            pl.BlockSpec((None, 1, Cout_p), lambda n, t: (n, 0, 0)),
        ],
        out_specs=pl.BlockSpec((None, tm, Cout_p), lambda n, t: (n, t, 0)),
        out_shape=jax.ShapeDtypeStruct((N, M_p, Cout_p), out_dtype),
        compiler_params=pltpu.CompilerParams(
            dimension_semantics=("parallel", "parallel"),
            vmem_limit_bytes=_VMEM_LIMIT),
        cost_estimate=cost2,
    )(conv_out, scale, shift)

    # TODO(synk): dropout_op is None in this config -> Identity (no-op).
    y = y[:, :M, :Cout].reshape(N, H, W, Cout)
    return jnp.transpose(y, (0, 3, 1, 2))                      # NHWC -> NCHW


# ---------------------------------------------------------------------------
# Pure-JAX reference (bias kept; it cancels under InstanceNorm) for checking.
# ---------------------------------------------------------------------------
def _reference(x_nchw, w_hwio, b, gamma, beta, *, eps=1e-5, neg_slope=1e-2):
    x = jnp.transpose(x_nchw, (0, 2, 3, 1)).astype(jnp.bfloat16)
    out = jax.lax.conv_general_dilated(
        x, w_hwio.astype(jnp.bfloat16), window_strides=(1, 1), padding="SAME",
        dimension_numbers=("NHWC", "HWIO", "NHWC"),
        preferred_element_type=jnp.float32)
    out = out + b[None, None, None, :].astype(jnp.float32)
    mean = jnp.mean(out, axis=(1, 2), keepdims=True)
    var = jnp.maximum(jnp.mean(out * out, axis=(1, 2), keepdims=True)
                      - mean * mean, 0.0)
    y = (out - mean) * jax.lax.rsqrt(var + eps)
    y = y * gamma[None, None, None, :] + beta[None, None, None, :]
    y = jnp.where(y > 0, y, neg_slope * y)
    return jnp.transpose(y, (0, 3, 1, 2)).astype(x_nchw.dtype)


if __name__ == "__main__":
    # ConvDropoutNormReLU(input_channels=4, output_channels=8, kernel_size=[3,3]),
    # batch 2, 16x16 images.
    N, Cin, H, W = 2, 4, 16, 16
    Cout, K = 8, 3

    key = jax.random.PRNGKey(0)
    kx, kw, kb, kg, kbt = jax.random.split(key, 5)
    x = jax.random.normal(kx, (N, Cin, H, W), jnp.float32)
    # PyTorch Conv2d weight layout (Cout, Cin, KH, KW) -> HWIO.
    w_oihw = 0.1 * jax.random.normal(kw, (Cout, Cin, K, K), jnp.float32)
    w_hwio = jnp.transpose(w_oihw, (2, 3, 1, 0))
    b = 0.1 * jax.random.normal(kb, (Cout,), jnp.float32)
    gamma = 1.0 + 0.1 * jax.random.normal(kg, (Cout,), jnp.float32)
    beta = 0.1 * jax.random.normal(kbt, (Cout,), jnp.float32)

    fwd = jax.jit(conv_dropout_norm_relu)
    y = fwd(x, w_hwio, b, gamma, beta)
    jax.block_until_ready(y)
    assert y.shape == (N, Cout, H, W), y.shape
    assert bool(jnp.all(jnp.isfinite(y)))

    y_ref = _reference(x, w_hwio, b, gamma, beta)
    err = float(jnp.max(jnp.abs(y - y_ref)))
    assert err < 3e-2, err   # bf16 MXU inputs + bf16 conv intermediate vs f32 ref

    print("KERNEL_OK")
</pallas_src>

<mosaic_0001>
module attributes {stable_mosaic.version = 11 : i64} {
  func.func @_conv_stats_kernel(%arg0: i32, %arg1: i32, %arg2: memref<1x256x128xbf16, #tpu.memory_space<vmem>>, %arg3: memref<128x128xbf16, #tpu.memory_space<vmem>>, %arg4: memref<1x256x128xbf16, #tpu.memory_space<vmem>>, %arg5: memref<1x1x2x128xf32, #tpu.memory_space<vmem>>) attributes {dimension_semantics = [#tpu.dimension_semantics<parallel>, #tpu.dimension_semantics<parallel>], iteration_bounds = array<i64: 2, 1>, scalar_prefetch = 0 : i64, scratch_operands = 0 : i64, tpu.core_type = #tpu.core_type<tc>, window_params = [{transform_indices = @transform_0, window_bounds = array<i64: 1, 256, 128>}, {pipeline_mode = #tpu.pipeline_mode<synchronous>, transform_indices = @transform_1, window_bounds = array<i64: 128, 128>}, {transform_indices = @transform_2, window_bounds = array<i64: 1, 256, 128>}, {transform_indices = @transform_3, window_bounds = array<i64: 1, 1, 2, 128>}]} {
    %c0 = arith.constant 0 : index
    %c0_0 = arith.constant 0 : index
    %c0_1 = arith.constant 0 : index
    %0 = vector.load %arg2[%c0, %c0_0, %c0_1] : memref<1x256x128xbf16, #tpu.memory_space<vmem>>, vector<1x256x128xbf16>
    %1 = vector.shape_cast %0 : vector<1x256x128xbf16> to vector<256x128xbf16>
    %c0_2 = arith.constant 0 : index
    %c0_3 = arith.constant 0 : index
    %2 = vector.load %arg3[%c0_2, %c0_3] : memref<128x128xbf16, #tpu.memory_space<vmem>>, vector<128x128xbf16>
    %cst = arith.constant dense<0.000000e+00> : vector<256x128xf32>
    %3 = tpu.matmul %1, %2, %cst {dimension_numbers = #tpu.dot_dimension_numbers<[1], [0], [0], [1], [0, 0, 1, 1], [], []>} : vector<256x128xbf16>, vector<128x128xbf16>, vector<256x128xf32> -> vector<256x128xf32>
    %4 = arith.truncf %3 : vector<256x128xf32> to vector<256x128xbf16>
    %c0_4 = arith.constant 0 : index
    %c0_5 = arith.constant 0 : index
    %c0_6 = arith.constant 0 : index
    %5 = vector.load %arg4[%c0_4, %c0_5, %c0_6] : memref<1x256x128xbf16, #tpu.memory_space<vmem>>, vector<1x256x128xbf16>
    %6 = vector.shape_cast %5 : vector<1x256x128xbf16> to vector<256x128xbf16>
    %7 = vector.shape_cast %4 : vector<256x128xbf16> to vector<1x256x128xbf16>
    tpu.vector_store %arg4[%c0_4, %c0_5, %c0_6], %7 {strides = array<i32>} : memref<1x256x128xbf16, #tpu.memory_space<vmem>>, vector<1x256x128xbf16>,
    %cst_7 = arith.constant dense<0.000000e+00> : vector<128xf32>
    %8 = vector.multi_reduction <add>, %3, %cst_7 [0] : vector<256x128xf32> to vector<128xf32>
    %9 = vector.shape_cast %8 : vector<128xf32> to vector<1x128xf32>
    %10 = arith.mulf %3, %3 : vector<256x128xf32>
    %cst_8 = arith.constant dense<0.000000e+00> : vector<128xf32>
    %11 = vector.multi_reduction <add>, %10, %cst_8 [0] : vector<256x128xf32> to vector<128xf32>
    %12 = vector.shape_cast %11 : vector<128xf32> to vector<1x128xf32>
    %13 = tpu.concatenate %9, %12 in 0 : vector<1x128xf32>, vector<1x128xf32> -> vector<2x128xf32>
    %c0_9 = arith.constant 0 : index
    %c0_10 = arith.constant 0 : index
    %c0_11 = arith.constant 0 : index
    %c0_12 = arith.constant 0 : index
    %14 = vector.load %arg5[%c0_9, %c0_10, %c0_11, %c0_12] : memref<1x1x2x128xf32, #tpu.memory_space<vmem>>, vector<1x1x2x128xf32>
    %15 = vector.shape_cast %14 : vector<1x1x2x128xf32> to vector<2x128xf32>
    %16 = vector.shape_cast %13 : vector<2x128xf32> to vector<1x1x2x128xf32>
    tpu.vector_store %arg5[%c0_9, %c0_10, %c0_11, %c0_12], %16 {strides = array<i32>} : memref<1x1x2x128xf32, #tpu.memory_space<vmem>>, vector<1x1x2x128xf32>,
    return
  }
  func.func @transform_0(%arg0: i32, %arg1: i32) -> (i32, i32, i32) {
    %c0_i32 = arith.constant 0 : i32
    %c0_i32_0 = arith.constant 0 : i32
    return %arg0, %arg1, %c0_i32 : i32, i32, i32
  }
  func.func @transform_1(%arg0: i32, %arg1: i32) -> (i32, i32) {
    %c0_i32 = arith.constant 0 : i32
    %c0_i32_0 = arith.constant 0 : i32
    %c0_i32_1 = arith.constant 0 : i32
    return %c0_i32, %c0_i32_0 : i32, i32
  }
  func.func @transform_2(%arg0: i32, %arg1: i32) -> (i32, i32, i32) {
    %c0_i32 = arith.constant 0 : i32
    %c0_i32_0 = arith.constant 0 : i32
    return %arg0, %arg1, %c0_i32 : i32, i32, i32
  }
  func.func @transform_3(%arg0: i32, %arg1: i32) -> (i32, i32, i32, i32) {
    %c0_i32 = arith.constant 0 : i32
    %c0_i32_0 = arith.constant 0 : i32
    %c0_i32_1 = arith.constant 0 : i32
    return %arg0, %arg1, %c0_i32, %c0_i32_0 : i32, i32, i32, i32
  }
}

module attributes {stable_mosaic.version = 11 : i64} {
  func.func @_norm_act_kernel(%arg0: i32, %arg1: i32, %arg2: memref<1x256x128xbf16, #tpu.memory_space<vmem>>, %arg3: memref<1x1x128xf32, #tpu.memory_space<vmem>>, %arg4: memref<1x1x128xf32, #tpu.memory_space<vmem>>, %arg5: memref<1x256x128xf32, #tpu.memory_space<vmem>>) attributes {dimension_semantics = [#tpu.dimension_semantics<parallel>, #tpu.dimension_semantics<parallel>], iteration_bounds = array<i64: 2, 1>, scalar_prefetch = 0 : i64, scratch_operands = 0 : i64, tpu.core_type = #tpu.core_type<tc>, window_params = [{transform_indices = @transform_0, window_bounds = array<i64: 1, 256, 128>}, {transform_indices = @transform_1, window_bounds = array<i64: 1, 1, 128>}, {transform_indices = @transform_2, window_bounds = array<i64: 1, 1, 128>}, {transform_indices = @transform_3, window_bounds = array<i64: 1, 256, 128>}]} {
    %c0 = arith.constant 0 : index
    %c0_0 = arith.constant 0 : index
    %c0_1 = arith.constant 0 : index
    %0 = vector.load %arg2[%c0, %c0_0, %c0_1] : memref<1x256x128xbf16, #tpu.memory_space<vmem>>, vector<1x256x128xbf16>
    %1 = vector.shape_cast %0 : vector<1x256x128xbf16> to vector<256x128xbf16>
    %2 = arith.extf %1 : vector<256x128xbf16> to vector<256x128xf32>
    %c0_2 = arith.constant 0 : index
    %c0_3 = arith.constant 0 : index
    %c0_4 = arith.constant 0 : index
    %3 = vector.load %arg3[%c0_2, %c0_3, %c0_4] : memref<1x1x128xf32, #tpu.memory_space<vmem>>, vector<1x1x128xf32>
    %4 = vector.shape_cast %3 : vector<1x1x128xf32> to vector<1x128xf32>
    %5 = vector.broadcast %4 : vector<1x128xf32> to vector<256x128xf32>
    %6 = arith.mulf %2, %5 : vector<256x128xf32>
    %c0_5 = arith.constant 0 : index
    %c0_6 = arith.constant 0 : index
    %c0_7 = arith.constant 0 : index
    %7 = vector.load %arg4[%c0_5, %c0_6, %c0_7] : memref<1x1x128xf32, #tpu.memory_space<vmem>>, vector<1x1x128xf32>
    %8 = vector.shape_cast %7 : vector<1x1x128xf32> to vector<1x128xf32>
    %9 = vector.broadcast %8 : vector<1x128xf32> to vector<256x128xf32>
    %10 = arith.addf %6, %9 : vector<256x128xf32>
    %cst = arith.constant 0.000000e+00 : f32
    %11 = vector.broadcast %cst : f32 to vector<256x128xf32>
    %12 = arith.cmpf ogt, %10, %11 : vector<256x128xf32>
    %cst_8 = arith.constant 0.00999999977 : f32
    %13 = vector.broadcast %cst_8 : f32 to vector<256x128xf32>
    %14 = arith.mulf %13, %10 : vector<256x128xf32>
    %15 = arith.select %12, %10, %14 : vector<256x128xi1>, vector<256x128xf32>
    %c0_9 = arith.constant 0 : index
    %c0_10 = arith.constant 0 : index
    %c0_11 = arith.constant 0 : index
    %16 = vector.load %arg5[%c0_9, %c0_10, %c0_11] : memref<1x256x128xf32, #tpu.memory_space<vmem>>, vector<1x256x128xf32>
    %17 = vector.shape_cast %16 : vector<1x256x128xf32> to vector<256x128xf32>
    %18 = vector.shape_cast %15 : vector<256x128xf32> to vector<1x256x128xf32>
    tpu.vector_store %arg5[%c0_9, %c0_10, %c0_11], %18 {strides = array<i32>} : memref<1x256x128xf32, #tpu.memory_space<vmem>>, vector<1x256x128xf32>,
    return
  }
  func.func @transform_0(%arg0: i32, %arg1: i32) -> (i32, i32, i32) {
    %c0_i32 = arith.constant 0 : i32
    %c0_i32_0 = arith.constant 0 : i32
    return %arg0, %arg1, %c0_i32 : i32, i32, i32
  }
  func.func @transform_1(%arg0: i32, %arg1: i32) -> (i32, i32, i32) {
    %c0_i32 = arith.constant 0 : i32
    %c0_i32_0 = arith.constant 0 : i32
    %c0_i32_1 = arith.constant 0 : i32
    return %arg0, %c0_i32, %c0_i32_0 : i32, i32, i32
  }
  func.func @transform_2(%arg0: i32, %arg1: i32) -> (i32, i32, i32) {
    %c0_i32 = arith.constant 0 : i32
    %c0_i32_0 = arith.constant 0 : i32
    %c0_i32_1 = arith.constant 0 : i32
    return %arg0, %c0_i32, %c0_i32_0 : i32, i32, i32
  }
  func.func @transform_3(%arg0: i32, %arg1: i32) -> (i32, i32, i32) {
    %c0_i32 = arith.constant 0 : i32
    %c0_i32_0 = arith.constant 0 : i32
    return %arg0, %arg1, %c0_i32 : i32, i32, i32
  }
}

</mosaic_0001>

<llo_original>
// kernel: conv_dropout_norm_relu.3
$region0: #{conv_dropout_norm_relu.3}
  #allocation0 [shape = 'u32[]', space=smem, size = 0x4, offset = 0x4, fixed_abs, tag = 'smem constant byte address 0x4 - core index']
  #allocation1 [shape = 'u32[72,128]{1,0:T(1,128)}', space=vmem, size = 0x9000, scoped, tag = 'internal scratch']
  %s0 = inlined_call_operand.vmem [shape: bf16[2,256,128], index: 0, kind: input, shape index: {}]
  %s1 = inlined_call_operand.vmem [shape: f32[2,1,128], index: 1, kind: input, shape index: {}]
  %s2 = inlined_call_operand.vmem [shape: f32[2,1,128], index: 2, kind: input, shape index: {}]
  %s3 = inlined_call_operand.vmem [shape: f32[2,256,128], index: 3, kind: output, shape index: {}]
  %s4 = sld [smem:[#allocation0]]
  $region45: #{conv_dropout_norm_relu.3} parent=0
    _
  %s6 = ssub.s32 1, %s4
  %s7 = scalar_select 0, %s6, %s4
  loop: start=0, step=1, limit=4
  $region2: #{conv_dropout_norm_relu.3} parent=0 // loop_pre_header
    _
  $region3: #{conv_dropout_norm_relu.3} parent=0 // loop_header
    %s9 = sphi 0, %s13
    %p10 = scmp.ge.s32.totalorder %s9, 4
    %s16 = sphi 0, %s28
    %s17 = sphi 0, %s24
    %s18 = sphi 0, %s16
    %s19 = sphi 0, %s17
    %s20 = sphi 0, %s18
    %s21 = sphi 0, %s19
    %s33 = sphi 0, %s35
    %s36 = sphi 0, %s33
    %s37 = sphi 0, %s36
    %s53 = sphi 0, %s37
    %s59 = sphi 0, %s61
    %s62 = sphi 0, %s59
    %s63 = sphi 0, %s62
    %s79 = sphi 0, %s63
    %s85 = sphi 0, %s87
    %s88 = sphi 0, %s85
    %s89 = sphi 0, %s88
    %s105 = sphi 0, %s89
    %s113 = sphi 0, %s115
    %s116 = sphi 0, %s113
    %s117 = sphi 0, %s116
    %s133 = sphi 0, %s117
  $region4: #{conv_dropout_norm_relu.3} parent=0 // loop_header_branch
    %12 = sbr.rel (%p10) target = $region8
  $region5: #{conv_dropout_norm_relu.3} parent=0 // loop_body
    %s14 = ssub.s32 %s9, 1
    %s15 = ssub.s32 %s9, 2
    %s22 = sadd.s32 1, %s17
    %p23 = scmp.ge.s32.totalorder %s22, 1
    %s24 = scalar_select %p23, 0, %s22
    %s25 = sadd.s32 1, %s16
    %s26 = scalar_select %p23, %s25, %s16
    %p27 = scmp.ge.s32.totalorder %s26, 2
    %s28 = scalar_select %p27, 0, %s26
    %s29 = ssub.s32 %s16, %s28
    %s30 = ssub.s32 %s17, %s24
    %s31 = sor.u32 %s29, %s30
    %p32 = scmp.eq.s32.totalorder %s31, 0
    %s34 = sadd.s32 %s33, 1
    %s35 = scalar_select %p32, %s33, %s34
    %p38 = pneg %p32
    %p39 = scmp.eq.s32.totalorder %s9, 1
    %p40 = por %p38, %p39
    %p41 = scmp.ne.s32.totalorder %s33, %s36
    %p42 = scmp.eq.s32.totalorder %s9, 0
    %p43 = por %p41, %p42
    %p44 = scmp.ne.s32.totalorder %s33, %s36
    %p45 = scmp.eq.s32.totalorder %s14, 1
    %p46 = por %p44, %p45
    %p47 = scmp.ne.s32.totalorder %s36, %s37
    %p48 = scmp.eq.s32.totalorder %s14, 0
    %p49 = por %p47, %p48
    %p50 = scmp.ne.s32.totalorder %s36, %s37
    %p51 = scmp.eq.s32.totalorder %s15, 1
    %p52 = por %p50, %p51
    %p54 = scmp.ne.s32.totalorder %s37, %s53
    %p55 = scmp.eq.s32.totalorder %s15, 0
    %p56 = por %p54, %p55
    %s57 = ssub.s32 %s16, %s28
    %p58 = scmp.eq.s32.totalorder %s57, 0
    %s60 = sadd.s32 %s59, 1
    %s61 = scalar_select %p58, %s59, %s60
    %p64 = pneg %p58
    %p65 = scmp.eq.s32.totalorder %s9, 1
    %p66 = por %p64, %p65
    %p67 = scmp.ne.s32.totalorder %s59, %s62
    %p68 = scmp.eq.s32.totalorder %s9, 0
    %p69 = por %p67, %p68
    %p70 = scmp.ne.s32.totalorder %s59, %s62
    %p71 = scmp.eq.s32.totalorder %s14, 1
    %p72 = por %p70, %p71
    %p73 = scmp.ne.s32.totalorder %s62, %s63
    %p74 = scmp.eq.s32.totalorder %s14, 0
    %p75 = por %p73, %p74
    %p76 = scmp.ne.s32.totalorder %s62, %s63
    %p77 = scmp.eq.s32.totalorder %s15, 1
    %p78 = por %p76, %p77
    %p80 = scmp.ne.s32.totalorder %s63, %s79
    %p81 = scmp.eq.s32.totalorder %s15, 0
    %p82 = por %p80, %p81
    %s83 = ssub.s32 %s16, %s28
    %p84 = scmp.eq.s32.totalorder %s83, 0
    %s86 = sadd.s32 %s85, 1
    %s87 = scalar_select %p84, %s85, %s86
    %p90 = pneg %p84
    %p91 = scmp.eq.s32.totalorder %s9, 1
    %p92 = por %p90, %p91
    %p93 = scmp.ne.s32.totalorder %s85, %s88
    %p94 = scmp.eq.s32.totalorder %s9, 0
    %p95 = por %p93, %p94
    %p96 = scmp.ne.s32.totalorder %s85, %s88
    %p97 = scmp.eq.s32.totalorder %s14, 1
    %p98 = por %p96, %p97
    %p99 = scmp.ne.s32.totalorder %s88, %s89
    %p100 = scmp.eq.s32.totalorder %s14, 0
    %p101 = por %p99, %p100
    %p102 = scmp.ne.s32.totalorder %s88, %s89
    %p103 = scmp.eq.s32.totalorder %s15, 1
    %p104 = por %p102, %p103
    %p106 = scmp.ne.s32.totalorder %s89, %s105
    %p107 = scmp.eq.s32.totalorder %s15, 0
    %p108 = por %p106, %p107
    %s109 = ssub.s32 %s16, %s28
    %s110 = ssub.s32 %s17, %s24
    %s111 = sor.u32 %s109, %s110
    %p112 = scmp.eq.s32.totalorder %s111, 0
    %s114 = sadd.s32 %s113, 1
    %s115 = scalar_select %p112, %s113, %s114
    %p118 = pneg %p112
    %p119 = scmp.eq.s32.totalorder %s9, 1
    %p120 = por %p118, %p119
    %p121 = scmp.ne.s32.totalorder %s113, %s116
    %p122 = scmp.eq.s32.totalorder %s9, 0
    %p123 = por %p121, %p122
    %p124 = scmp.ne.s32.totalorder %s113, %s116
    %p125 = scmp.eq.s32.totalorder %s14, 1
    %p126 = por %p124, %p125
    %p127 = scmp.ne.s32.totalorder %s116, %s117
    %p128 = scmp.eq.s32.totalorder %s14, 0
    %p129 = por %p127, %p128
    %p130 = scmp.ne.s32.totalorder %s116, %s117
    %p131 = scmp.eq.s32.totalorder %s15, 1
    %p132 = por %p130, %p131
    %p134 = scmp.ne.s32.totalorder %s117, %s133
    %p135 = scmp.eq.s32.totalorder %s15, 0
    %p136 = por %p134, %p135
    %p137 = scmp.le.s32.totalorder 1, %s9
    %p138 = scmp.lt.s32.totalorder %s9, 3
    %p139 = pnand %p137, %p138
    %p140 = pneg %p139
    // Predicated region
    $region9: #{conv_dropout_norm_relu.3} parent=5 // pred_check
      _
    $region10: #{conv_dropout_norm_relu.3} parent=5 // pred_check_branch
      %142 = sbr.rel (%p139) target = $region12
    $region11: #{conv_dropout_norm_relu.3} parent=5 // pred_region
      %s143 = ssub.s32 %s9, 1
    $region12: #{conv_dropout_norm_relu.3} parent=5 // pred_fallthru
      _
    %p144 = scmp.lt.s32.totalorder %s9, 2
    // Predicated region
    $region13: #{conv_dropout_norm_relu.3} parent=5 // pred_check
      %p145 = pneg %p144
    $region14: #{conv_dropout_norm_relu.3} parent=5 // pred_check_branch
      %147 = sbr.rel (%p145) target = $region16
    $region15: #{conv_dropout_norm_relu.3} parent=5 // pred_region
      // Predicated region
      $region17: #{conv_dropout_norm_relu.3} parent=15 // pred_check
        %p148 = pneg %p43
      $region18: #{conv_dropout_norm_relu.3} parent=15 // pred_check_branch
        %150 = sbr.rel (%p148) target = $region20
      $region19: #{conv_dropout_norm_relu.3} parent=15 // pred_region
        %s151 = smul.u32 32, %s17
        %p152 = scmp.lt.s32.totalorder %s16, 1
        %s153 = scalar_select %p152, %s16, 1
        %p154 = scmp.lt.s32.totalorder %s151, 31
        %s155 = scalar_select %p154, %s151, 31
        %s156 = smul.addr %s153, 32
        %s157 = sadd.s32 %s155, %s156
        %s158 = smul.addr %s157, 4
        %s159 = scalar_lea.vmem %s0, %s158
        %s160 = smul.u32 32, %s17
      $region20: #{conv_dropout_norm_relu.3} parent=15 // pred_fallthru
        _
      // Predicated region
      $region21: #{conv_dropout_norm_relu.3} parent=15 // pred_check
        %p161 = pneg %p69
      $region22: #{conv_dropout_norm_relu.3} parent=15 // pred_check_branch
        %163 = sbr.rel (%p161) target = $region24
      $region23: #{conv_dropout_norm_relu.3} parent=15 // pred_region
        %p164 = scmp.lt.s32.totalorder %s16, 1
        %s165 = scalar_select %p164, %s16, 1
        %s166 = scalar_lea.vmem %s1, %s165
      $region24: #{conv_dropout_norm_relu.3} parent=15 // pred_fallthru
        _
      // Predicated region
      $region25: #{conv_dropout_norm_relu.3} parent=15 // pred_check
        %p167 = pneg %p95
      $region26: #{conv_dropout_norm_relu.3} parent=15 // pred_check_branch
        %169 = sbr.rel (%p167) target = $region28
      $region27: #{conv_dropout_norm_relu.3} parent=15 // pred_region
        %p170 = scmp.lt.s32.totalorder %s16, 1
        %s171 = scalar_select %p170, %s16, 1
        %s172 = scalar_lea.vmem %s2, %s171
      $region28: #{conv_dropout_norm_relu.3} parent=15 // pred_fallthru
        _
    $region16: #{conv_dropout_norm_relu.3} parent=5 // pred_fallthru
      _
    %p173 = scmp.le.s32.totalorder 1, %s9
    %p174 = scmp.lt.s32.totalorder %s9, 3
    %p175 = pnand %p173, %p174
    %p176 = pneg %p175
    // Predicated region
    $region29: #{conv_dropout_norm_relu.3} parent=5 // pred_check
      _
    $region30: #{conv_dropout_norm_relu.3} parent=5 // pred_check_branch
      %178 = sbr.rel (%p175) target = $region32
    $region31: #{conv_dropout_norm_relu.3} parent=5 // pred_region
      %s179 = ssub.s32 %s9, 1
      %s180 = smul.u32 32, %s19
      %p181 = scmp.lt.s32.totalorder %s18, 1
      %s182 = scalar_select %p181, %s18, 1
      %p183 = scmp.lt.s32.totalorder %s180, 31
      %s184 = scalar_select %p183, %s180, 31
      %s185 = smul.addr %s182, 32
      %s186 = sadd.s32 %s184, %s185
      %s187 = smul.addr %s186, 4
      %s188 = scalar_lea.vmem %s0, %s187
      %p189 = pneg %p49
      %p190 = pneg %p46
      %p191 = scmp.lt.s32.totalorder %s18, 1
      %s192 = scalar_select %p191, %s18, 1
      %s193 = scalar_lea.vmem %s1, %s192
      %p194 = pneg %p75
      %p195 = pneg %p72
      %p196 = scmp.lt.s32.totalorder %s18, 1
      %s197 = scalar_select %p196, %s18, 1
      %s198 = scalar_lea.vmem %s2, %s197
      %p199 = pneg %p101
      %p200 = pneg %p98
      %p201 = pneg %p129
      %p202 = pneg %p126
      %s203 = smul.u32 32, %s19
      %p204 = scmp.lt.s32.totalorder %s18, 1
      %s205 = scalar_select %p204, %s18, 1
      %p206 = scmp.lt.s32.totalorder %s203, 31
      %s207 = scalar_select %p206, %s203, 31
      %s208 = smul.addr %s205, 32
      %s209 = sadd.s32 %s207, %s208
      %s210 = smul.addr %s209, 8
      %s211 = scalar_lea.vmem %s3, %s210
      %s212 = smul.u32 32, %s19
      %p213 = scmp.lt.s32.totalorder %s18, 1
      %s214 = scalar_select %p213, %s18, 1
      %p215 = scmp.lt.s32.totalorder %s212, 31
      %s216 = scalar_select %p215, %s212, 31
      %s217 = smul.addr %s214, 32
      %s218 = sadd.s32 %s216, %s217
      %s219 = smul.addr %s218, 4
      %s220 = scalar_lea.vmem %s0, %s219
      %s221 = smul.u32 32, %s19
      %p222 = scmp.lt.s32.totalorder %s18, 1
      %s223 = scalar_select %p222, %s18, 1
      %s224 = scalar_lea.vmem %s1, %s223
      %p225 = scmp.lt.s32.totalorder %s18, 1
      %s226 = scalar_select %p225, %s18, 1
      %s227 = scalar_lea.vmem %s2, %s226
      %s228 = smul.u32 32, %s19
      %p229 = scmp.lt.s32.totalorder %s18, 1
      %s230 = scalar_select %p229, %s18, 1
      %p231 = scmp.lt.s32.totalorder %s228, 31
      %s232 = scalar_select %p231, %s228, 31
      %s233 = smul.addr %s230, 32
      %s234 = sadd.s32 %s232, %s233
      %s235 = smul.addr %s234, 8
      %s236 = scalar_lea.vmem %s3, %s235
      %s237 = smul.u32 32, %s19
      %v238 = vld [vmem:[%s220] sm:$0xf]
      %v239 = vld [vmem:[%s220 + $0x4] sm:$0xf]
      %v240 = vld [vmem:[%s220 + $0x8] sm:$0xf]
      %v241 = vld [vmem:[%s220 + $0xc] sm:$0xf]
      %v242 = vld [vmem:[%s220 + $0x10] sm:$0xf]
      %v243 = vld [vmem:[%s220 + $0x14] sm:$0xf]
      %v244 = vld [vmem:[%s220 + $0x18] sm:$0xf]
      %v245 = vld [vmem:[%s220 + $0x1c] sm:$0xf]
      %v246 = vld [vmem:[%s220 + $0x20] sm:$0xf]
      %v247 = vld [vmem:[%s220 + $0x24] sm:$0xf]
      %v248 = vld [vmem:[%s220 + $0x28] sm:$0xf]
      %v249 = vld [vmem:[%s220 + $0x2c] sm:$0xf]
      %v250 = vld [vmem:[%s220 + $0x30] sm:$0xf]
      %v251 = vld [vmem:[%s220 + $0x34] sm:$0xf]
      %v252 = vld [vmem:[%s220 + $0x38] sm:$0xf]
      %v253 = vld [vmem:[%s220 + $0x3c] sm:$0xf]
      %v254 = vld [vmem:[%s220 + $0x40] sm:$0xf]
      %v255 = vld [vmem:[%s220 + $0x44] sm:$0xf]
      %v256 = vld [vmem:[%s220 + $0x48] sm:$0xf]
      %v257 = vld [vmem:[%s220 + $0x4c] sm:$0xf]
      %v258 = vld [vmem:[%s220 + $0x50] sm:$0xf]
      %v259 = vld [vmem:[%s220 + $0x54] sm:$0xf]
      %v260 = vld [vmem:[%s220 + $0x58] sm:$0xf]
      %v261 = vld [vmem:[%s220 + $0x5c] sm:$0xf]
      %v262 = vld [vmem:[%s220 + $0x60] sm:$0xf]
      %v263 = vld [vmem:[%s220 + $0x64] sm:$0xf]
      %v264 = vld [vmem:[%s220 + $0x68] sm:$0xf]
      %v265 = vld [vmem:[%s220 + $0x6c] sm:$0xf]
      %v266 = vld [vmem:[%s220 + $0x70] sm:$0xf]
      %v267 = vld [vmem:[%s220 + $0x74] sm:$0xf]
      %v268 = vld [vmem:[%s220 + $0x78] sm:$0xf]
      %v269 = vld [vmem:[%s220 + $0x7c] sm:$0xf]
      %v270 = vunpack.c.l.bf16 %v238
      %v271 = vunpack.c.l.bf16 %v239
      %v272 = vunpack.c.l.bf16 %v240
      %v273 = vunpack.c.l.bf16 %v241
      %v274 = vunpack.c.l.bf16 %v242
      %v275 = vunpack.c.l.bf16 %v243
      %v276 = vunpack.c.l.bf16 %v244
      %v277 = vunpack.c.l.bf16 %v245
      %v278 = vunpack.c.l.bf16 %v246
      %v279 = vunpack.c.l.bf16 %v247
      %v280 = vunpack.c.l.bf16 %v248
      %v281 = vunpack.c.l.bf16 %v249
      %v282 = vunpack.c.l.bf16 %v250
      %v283 = vunpack.c.l.bf16 %v251
      %v284 = vunpack.c.l.bf16 %v252
      %v285 = vunpack.c.l.bf16 %v253
      %v286 = vunpack.c.l.bf16 %v254
      %v287 = vunpack.c.l.bf16 %v255
      %v288 = vunpack.c.l.bf16 %v256
      %v289 = vunpack.c.l.bf16 %v257
      %v290 = vunpack.c.l.bf16 %v258
      %v291 = vunpack.c.l.bf16 %v259
      %v292 = vunpack.c.l.bf16 %v260
      %v293 = vunpack.c.l.bf16 %v261
      %v294 = vunpack.c.l.bf16 %v262
      %v295 = vunpack.c.l.bf16 %v263
      %v296 = vunpack.c.l.bf16 %v264
      %v297 = vunpack.c.l.bf16 %v265
      %v298 = vunpack.c.l.bf16 %v266
      %v299 = vunpack.c.l.bf16 %v267
      %v300 = vunpack.c.l.bf16 %v268
      %v301 = vunpack.c.l.bf16 %v269
      %v302 = vld [vmem:[%s224] sm:$0x1]
      %v304 = vperm.slane %v302, 0
      %v306 = vmul.f32 %v270, %v304
      %v307 = vmul.f32 %v271, %v304
      %v308 = vmul.f32 %v272, %v304
      %v309 = vmul.f32 %v273, %v304
      %v310 = vmul.f32 %v274, %v304
      %v311 = vmul.f32 %v275, %v304
      %v312 = vmul.f32 %v276, %v304
      %v313 = vmul.f32 %v277, %v304
      %v314 = vmul.f32 %v278, %v304
      %v315 = vmul.f32 %v279, %v304
      %v316 = vmul.f32 %v280, %v304
      %v317 = vmul.f32 %v281, %v304
      %v318 = vmul.f32 %v282, %v304
      %v319 = vmul.f32 %v283, %v304
      %v320 = vmul.f32 %v284, %v304
      %v321 = vmul.f32 %v285, %v304
      %v322 = vmul.f32 %v286, %v304
      %v323 = vmul.f32 %v287, %v304
      %v324 = vmul.f32 %v288, %v304
      %v325 = vmul.f32 %v289, %v304
      %v326 = vmul.f32 %v290, %v304
      %v327 = vmul.f32 %v291, %v304
      %v328 = vmul.f32 %v292, %v304
      %v329 = vmul.f32 %v293, %v304
      %v330 = vmul.f32 %v294, %v304
      %v331 = vmul.f32 %v295, %v304
      %v332 = vmul.f32 %v296, %v304
      %v333 = vmul.f32 %v297, %v304
      %v334 = vmul.f32 %v298, %v304
      %v335 = vmul.f32 %v299, %v304
      %v336 = vmul.f32 %v300, %v304
      %v337 = vmul.f32 %v301, %v304
      %v338 = vld [vmem:[%s227] sm:$0x1]
      %v340 = vperm.slane %v338, 0
      %v342 = vadd.f32 %v306, %v340
      %v343 = vadd.f32 %v307, %v340
      %v344 = vadd.f32 %v308, %v340
      %v345 = vadd.f32 %v309, %v340
      %v346 = vadd.f32 %v310, %v340
      %v347 = vadd.f32 %v311, %v340
      %v348 = vadd.f32 %v312, %v340
      %v349 = vadd.f32 %v313, %v340
      %v350 = vadd.f32 %v314, %v340
      %v351 = vadd.f32 %v315, %v340
      %v352 = vadd.f32 %v316, %v340
      %v353 = vadd.f32 %v317, %v340
      %v354 = vadd.f32 %v318, %v340
      %v355 = vadd.f32 %v319, %v340
      %v356 = vadd.f32 %v320, %v340
      %v357 = vadd.f32 %v321, %v340
      %v358 = vadd.f32 %v322, %v340
      %v359 = vadd.f32 %v323, %v340
      %v360 = vadd.f32 %v324, %v340
      %v361 = vadd.f32 %v325, %v340
      %v362 = vadd.f32 %v326, %v340
      %v363 = vadd.f32 %v327, %v340
      %v364 = vadd.f32 %v328, %v340
      %v365 = vadd.f32 %v329, %v340
      %v366 = vadd.f32 %v330, %v340
      %v367 = vadd.f32 %v331, %v340
      %v368 = vadd.f32 %v332, %v340
      %v369 = vadd.f32 %v333, %v340
      %v370 = vadd.f32 %v334, %v340
      %v371 = vadd.f32 %v335, %v340
      %v372 = vadd.f32 %v336, %v340
      %v373 = vadd.f32 %v337, %v340
      %vm374 = vcmp.gt.f32.partialorder %v342, 0.0
      %vm375 = vcmp.gt.f32.partialorder %v343, 0.0
      %vm376 = vcmp.gt.f32.partialorder %v344, 0.0
      %vm377 = vcmp.gt.f32.partialorder %v345, 0.0
      %vm378 = vcmp.gt.f32.partialorder %v346, 0.0
      %vm379 = vcmp.gt.f32.partialorder %v347, 0.0
      %vm380 = vcmp.gt.f32.partialorder %v348, 0.0
      %vm381 = vcmp.gt.f32.partialorder %v349, 0.0
      %vm382 = vcmp.gt.f32.partialorder %v350, 0.0
      %vm383 = vcmp.gt.f32.partialorder %v351, 0.0
      %vm384 = vcmp.gt.f32.partialorder %v352, 0.0
      %vm385 = vcmp.gt.f32.partialorder %v353, 0.0
      %vm386 = vcmp.gt.f32.partialorder %v354, 0.0
      %vm387 = vcmp.gt.f32.partialorder %v355, 0.0
      %vm388 = vcmp.gt.f32.partialorder %v356, 0.0
      %vm389 = vcmp.gt.f32.partialorder %v357, 0.0
      %vm390 = vcmp.gt.f32.partialorder %v358, 0.0
      %vm391 = vcmp.gt.f32.partialorder %v359, 0.0
      %vm392 = vcmp.gt.f32.partialorder %v360, 0.0
      %vm393 = vcmp.gt.f32.partialorder %v361, 0.0
      %vm394 = vcmp.gt.f32.partialorder %v362, 0.0
      %vm395 = vcmp.gt.f32.partialorder %v363, 0.0
      %vm396 = vcmp.gt.f32.partialorder %v364, 0.0
      %vm397 = vcmp.gt.f32.partialorder %v365, 0.0
      %vm398 = vcmp.gt.f32.partialorder %v366, 0.0
      %vm399 = vcmp.gt.f32.partialorder %v367, 0.0
      %vm400 = vcmp.gt.f32.partialorder %v368, 0.0
      %vm401 = vcmp.gt.f32.partialorder %v369, 0.0
      %vm402 = vcmp.gt.f32.partialorder %v370, 0.0
      %vm403 = vcmp.gt.f32.partialorder %v371, 0.0
      %vm404 = vcmp.gt.f32.partialorder %v372, 0.0
      %vm405 = vcmp.gt.f32.partialorder %v373, 0.0
      %v406 = vmul.f32 %v342, 0.01
      %v407 = vmul.f32 %v343, 0.01
      %v408 = vmul.f32 %v344, 0.01
      %v409 = vmul.f32 %v345, 0.01
      %v410 = vmul.f32 %v346, 0.01
      %v411 = vmul.f32 %v347, 0.01
      %v412 = vmul.f32 %v348, 0.01
      %v413 = vmul.f32 %v349, 0.01
      %v414 = vmul.f32 %v350, 0.01
      %v415 = vmul.f32 %v351, 0.01
      %v416 = vmul.f32 %v352, 0.01
      %v417 = vmul.f32 %v353, 0.01
      %v418 = vmul.f32 %v354, 0.01
      %v419 = vmul.f32 %v355, 0.01
      %v420 = vmul.f32 %v356, 0.01
      %v421 = vmul.f32 %v357, 0.01
      %v422 = vmul.f32 %v358, 0.01
      %v423 = vmul.f32 %v359, 0.01
      %v424 = vmul.f32 %v360, 0.01
      %v425 = vmul.f32 %v361, 0.01
      %v426 = vmul.f32 %v362, 0.01
      %v427 = vmul.f32 %v363, 0.01
      %v428 = vmul.f32 %v364, 0.01
      %v429 = vmul.f32 %v365, 0.01
      %v430 = vmul.f32 %v366, 0.01
      %v431 = vmul.f32 %v367, 0.01
      %v432 = vmul.f32 %v368, 0.01
      %v433 = vmul.f32 %v369, 0.01
      %v434 = vmul.f32 %v370, 0.01
      %v435 = vmul.f32 %v371, 0.01
      %v436 = vmul.f32 %v372, 0.01
      %v437 = vmul.f32 %v373, 0.01
      %v438 = vsel %vm374, %v342, %v406
      %v439 = vsel %vm375, %v343, %v407
      %v440 = vsel %vm376, %v344, %v408
      %v441 = vsel %vm377, %v345, %v409
      %v442 = vsel %vm378, %v346, %v410
      %v443 = vsel %vm379, %v347, %v411
      %v444 = vsel %vm380, %v348, %v412
      %v445 = vsel %vm381, %v349, %v413
      %v446 = vsel %vm382, %v350, %v414
      %v447 = vsel %vm383, %v351, %v415
      %v448 = vsel %vm384, %v352, %v416
      %v449 = vsel %vm385, %v353, %v417
      %v450 = vsel %vm386, %v354, %v418
      %v451 = vsel %vm387, %v355, %v419
      %v452 = vsel %vm388, %v356, %v420
      %v453 = vsel %vm389, %v357, %v421
      %v454 = vsel %vm390, %v358, %v422
      %v455 = vsel %vm391, %v359, %v423
      %v456 = vsel %vm392, %v360, %v424
      %v457 = vsel %vm393, %v361, %v425
      %v458 = vsel %vm394, %v362, %v426
      %v459 = vsel %vm395, %v363, %v427
      %v460 = vsel %vm396, %v364, %v428
      %v461 = vsel %vm397, %v365, %v429
      %v462 = vsel %vm398, %v366, %v430
      %v463 = vsel %vm399, %v367, %v431
      %v464 = vsel %vm400, %v368, %v432
      %v465 = vsel %vm401, %v369, %v433
      %v466 = vsel %vm402, %v370, %v434
      %v467 = vsel %vm403, %v371, %v435
      %v468 = vsel %vm404, %v372, %v436
      %v469 = vsel %vm405, %v373, %v437
      %470 = vst [vmem:[%s236] sm:$0xff] %v438
      %471 = vst [vmem:[%s236 + $0x8] sm:$0xff] %v439
      %472 = vst [vmem:[%s236 + $0x10] sm:$0xff] %v440
      %473 = vst [vmem:[%s236 + $0x18] sm:$0xff] %v441
      %474 = vst [vmem:[%s236 + $0x20] sm:$0xff] %v442
      %475 = vst [vmem:[%s236 + $0x28] sm:$0xff] %v443
      %476 = vst [vmem:[%s236 + $0x30] sm:$0xff] %v444
      %477 = vst [vmem:[%s236 + $0x38] sm:$0xff] %v445
      %478 = vst [vmem:[%s236 + $0x40] sm:$0xff] %v446
      %479 = vst [vmem:[%s236 + $0x48] sm:$0xff] %v447
      %480 = vst [vmem:[%s236 + $0x50] sm:$0xff] %v448
      %481 = vst [vmem:[%s236 + $0x58] sm:$0xff] %v449
      %482 = vst [vmem:[%s236 + $0x60] sm:$0xff] %v450
      %483 = vst [vmem:[%s236 + $0x68] sm:$0xff] %v451
      %484 = vst [vmem:[%s236 + $0x70] sm:$0xff] %v452
      %485 = vst [vmem:[%s236 + $0x78] sm:$0xff] %v453
      %486 = vst [vmem:[%s236 + $0x80] sm:$0xff] %v454
      %487 = vst [vmem:[%s236 + $0x88] sm:$0xff] %v455
      %488 = vst [vmem:[%s236 + $0x90] sm:$0xff] %v456
      %489 = vst [vmem:[%s236 + $0x98] sm:$0xff] %v457
      %490 = vst [vmem:[%s236 + $0xa0] sm:$0xff] %v458
      %491 = vst [vmem:[%s236 + $0xa8] sm:$0xff] %v459
      %492 = vst [vmem:[%s236 + $0xb0] sm:$0xff] %v460
      %493 = vst [vmem:[%s236 + $0xb8] sm:$0xff] %v461
      %494 = vst [vmem:[%s236 + $0xc0] sm:$0xff] %v462
      %495 = vst [vmem:[%s236 + $0xc8] sm:$0xff] %v463
      %496 = vst [vmem:[%s236 + $0xd0] sm:$0xff] %v464
      %497 = vst [vmem:[%s236 + $0xd8] sm:$0xff] %v465
      %498 = vst [vmem:[%s236 + $0xe0] sm:$0xff] %v466
      %499 = vst [vmem:[%s236 + $0xe8] sm:$0xff] %v467
      %500 = vst [vmem:[%s236 + $0xf0] sm:$0xff] %v468
      %501 = vst [vmem:[%s236 + $0xf8] sm:$0xff] %v469
      %s502 = smul.u32 32, %s19
      %p503 = scmp.lt.s32.totalorder %s18, 1
      %s504 = scalar_select %p503, %s18, 1
      %p505 = scmp.lt.s32.totalorder %s502, 31
      %s506 = scalar_select %p505, %s502, 31
      %s507 = smul.addr %s504, 32
      %s508 = sadd.s32 %s506, %s507
      %s509 = smul.addr %s508, 8
      %s510 = scalar_lea.vmem %s3, %s509
      // Predicated region
      $region33: #{conv_dropout_norm_relu.3} parent=31 // pred_check
        %p511 = pneg %p126
      $region34: #{conv_dropout_norm_relu.3} parent=31 // pred_check_branch
        %513 = sbr.rel (%p511) target = $region36
      $region35: #{conv_dropout_norm_relu.3} parent=31 // pred_region
        %s514 = smul.u32 32, %s19
      $region36: #{conv_dropout_norm_relu.3} parent=31 // pred_fallthru
        _
    $region32: #{conv_dropout_norm_relu.3} parent=5 // pred_fallthru
      _
    %p515 = scmp.le.s32.totalorder 2, %s9
    // Predicated region
    $region37: #{conv_dropout_norm_relu.3} parent=5 // pred_check
      %p516 = pneg %p515
    $region38: #{conv_dropout_norm_relu.3} parent=5 // pred_check_branch
      %518 = sbr.rel (%p516) target = $region40
    $region39: #{conv_dropout_norm_relu.3} parent=5 // pred_region
      %s519 = ssub.s32 %s9, 2
      // Predicated region
      $region41: #{conv_dropout_norm_relu.3} parent=39 // pred_check
        %p520 = pneg %p132
      $region42: #{conv_dropout_norm_relu.3} parent=39 // pred_check_branch
        %522 = sbr.rel (%p520) target = $region44
      $region43: #{conv_dropout_norm_relu.3} parent=39 // pred_region
        %s523 = smul.u32 32, %s21
        %p524 = scmp.lt.s32.totalorder %s20, 1
        %s525 = scalar_select %p524, %s20, 1
        %p526 = scmp.lt.s32.totalorder %s523, 31
        %s527 = scalar_select %p526, %s523, 31
        %s528 = smul.addr %s525, 32
        %s529 = sadd.s32 %s527, %s528
        %s530 = smul.addr %s529, 8
        %s531 = scalar_lea.vmem %s3, %s530
      $region44: #{conv_dropout_norm_relu.3} parent=39 // pred_fallthru
        _
    $region40: #{conv_dropout_norm_relu.3} parent=5 // pred_fallthru
      _
  $region6: #{conv_dropout_norm_relu.3} parent=0 // loop_footer
    %s13 = sadd.s32 1, %s9
  $region7: #{conv_dropout_norm_relu.3} parent=0 // loop_footer_branch
    %8 = sbr.rel target = $region3
  $region8: #{conv_dropout_norm_relu.3} parent=0 // loop_exit
    _

// kernel: conv_dropout_norm_relu.2
$region0: #{conv_dropout_norm_relu.2}
  #allocation0 [shape = 'u32[]', space=smem, size = 0x4, offset = 0x4, fixed_abs, tag = 'smem constant byte address 0x4 - core index']
  #allocation1 [shape = 'u32[72,128]{1,0:T(1,128)}', space=vmem, size = 0x9000, scoped, tag = 'internal scratch']
  %s0 = inlined_call_operand.vmem [shape: bf16[2,256,128], index: 0, kind: input, shape index: {}]
  %s1 = inlined_call_operand.vmem [shape: bf16[128,128], index: 1, kind: input, shape index: {}]
  %s2 = inlined_call_operand.vmem [shape: bf16[2,256,128], index: 2, kind: output, shape index: {0}]
  %s3 = inlined_call_operand.vmem [shape: f32[2,1,2,128], index: 3, kind: output, shape index: {1}]
  %4 = xla_tuple %s2, %s3
  %s5 = sld [smem:[#allocation0]]
  $region49: #{conv_dropout_norm_relu.2} parent=0
    _
  %s7 = ssub.s32 1, %s5
  %s8 = scalar_select 0, %s7, %s5
  loop: start=0, step=1, limit=4
  $region2: #{conv_dropout_norm_relu.2} parent=0 // loop_pre_header
    _
  $region3: #{conv_dropout_norm_relu.2} parent=0 // loop_header
    %s10 = sphi 0, %s14
    %p11 = scmp.ge.s32.totalorder %s10, 4
    %s17 = sphi 0, %s29
    %s18 = sphi 0, %s25
    %s19 = sphi 0, %s17
    %s20 = sphi 0, %s18
    %s21 = sphi 0, %s19
    %s22 = sphi 0, %s20
    %s34 = sphi 0, %s36
    %s37 = sphi 0, %s34
    %s38 = sphi 0, %s37
    %s54 = sphi 0, %s38
    %s58 = sphi 0, %s58
    %s60 = sphi 0, %s58
    %s61 = sphi 0, %s60
    %s75 = sphi 0, %s61
    %s83 = sphi 0, %s85
    %s86 = sphi 0, %s83
    %s87 = sphi 0, %s86
    %s103 = sphi 0, %s87
    %s111 = sphi 0, %s113
    %s114 = sphi 0, %s111
    %s115 = sphi 0, %s114
    %s131 = sphi 0, %s115
  $region4: #{conv_dropout_norm_relu.2} parent=0 // loop_header_branch
    %13 = sbr.rel (%p11) target = $region8
  $region5: #{conv_dropout_norm_relu.2} parent=0 // loop_body
    %s15 = ssub.s32 %s10, 1
    %s16 = ssub.s32 %s10, 2
    %s23 = sadd.s32 1, %s18
    %p24 = scmp.ge.s32.totalorder %s23, 1
    %s25 = scalar_select %p24, 0, %s23
    %s26 = sadd.s32 1, %s17
    %s27 = scalar_select %p24, %s26, %s17
    %p28 = scmp.ge.s32.totalorder %s27, 2
    %s29 = scalar_select %p28, 0, %s27
    %s30 = ssub.s32 %s17, %s29
    %s31 = ssub.s32 %s18, %s25
    %s32 = sor.u32 %s30, %s31
    %p33 = scmp.eq.s32.totalorder %s32, 0
    %s35 = sadd.s32 %s34, 1
    %s36 = scalar_select %p33, %s34, %s35
    %p39 = pneg %p33
    %p40 = scmp.eq.s32.totalorder %s10, 1
    %p41 = por %p39, %p40
    %p42 = scmp.ne.s32.totalorder %s34, %s37
    %p43 = scmp.eq.s32.totalorder %s10, 0
    %p44 = por %p42, %p43
    %p45 = scmp.ne.s32.totalorder %s34, %s37
    %p46 = scmp.eq.s32.totalorder %s15, 1
    %p47 = por %p45, %p46
    %p48 = scmp.ne.s32.totalorder %s37, %s38
    %p49 = scmp.eq.s32.totalorder %s15, 0
    %p50 = por %p48, %p49
    %p51 = scmp.ne.s32.totalorder %s37, %s38
    %p52 = scmp.eq.s32.totalorder %s16, 1
    %p53 = por %p51, %p52
    %p55 = scmp.ne.s32.totalorder %s38, %s54
    %p56 = scmp.eq.s32.totalorder %s16, 0
    %p57 = por %p55, %p56
    %s59 = sadd.s32 %s58, 1
    %p62 = scmp.eq.s32.totalorder %s10, 1
    %p63 = scmp.ne.s32.totalorder %s58, %s60
    %p64 = scmp.eq.s32.totalorder %s10, 0
    %p65 = por %p63, %p64
    %p66 = scmp.ne.s32.totalorder %s58, %s60
    %p67 = scmp.eq.s32.totalorder %s15, 1
    %p68 = por %p66, %p67
    %p69 = scmp.ne.s32.totalorder %s60, %s61
    %p70 = scmp.eq.s32.totalorder %s15, 0
    %p71 = por %p69, %p70
    %p72 = scmp.ne.s32.totalorder %s60, %s61
    %p73 = scmp.eq.s32.totalorder %s16, 1
    %p74 = por %p72, %p73
    %p76 = scmp.ne.s32.totalorder %s61, %s75
    %p77 = scmp.eq.s32.totalorder %s16, 0
    %p78 = por %p76, %p77
    %s79 = ssub.s32 %s17, %s29
    %s80 = ssub.s32 %s18, %s25
    %s81 = sor.u32 %s79, %s80
    %p82 = scmp.eq.s32.totalorder %s81, 0
    %s84 = sadd.s32 %s83, 1
    %s85 = scalar_select %p82, %s83, %s84
    %p88 = pneg %p82
    %p89 = scmp.eq.s32.totalorder %s10, 1
    %p90 = por %p88, %p89
    %p91 = scmp.ne.s32.totalorder %s83, %s86
    %p92 = scmp.eq.s32.totalorder %s10, 0
    %p93 = por %p91, %p92
    %p94 = scmp.ne.s32.totalorder %s83, %s86
    %p95 = scmp.eq.s32.totalorder %s15, 1
    %p96 = por %p94, %p95
    %p97 = scmp.ne.s32.totalorder %s86, %s87
    %p98 = scmp.eq.s32.totalorder %s15, 0
    %p99 = por %p97, %p98
    %p100 = scmp.ne.s32.totalorder %s86, %s87
    %p101 = scmp.eq.s32.totalorder %s16, 1
    %p102 = por %p100, %p101
    %p104 = scmp.ne.s32.totalorder %s87, %s103
    %p105 = scmp.eq.s32.totalorder %s16, 0
    %p106 = por %p104, %p105
    %s107 = ssub.s32 %s17, %s29
    %s108 = ssub.s32 %s18, %s25
    %s109 = sor.u32 %s107, %s108
    %p110 = scmp.eq.s32.totalorder %s109, 0
    %s112 = sadd.s32 %s111, 1
    %s113 = scalar_select %p110, %s111, %s112
    %p116 = pneg %p110
    %p117 = scmp.eq.s32.totalorder %s10, 1
    %p118 = por %p116, %p117
    %p119 = scmp.ne.s32.totalorder %s111, %s114
    %p120 = scmp.eq.s32.totalorder %s10, 0
    %p121 = por %p119, %p120
    %p122 = scmp.ne.s32.totalorder %s111, %s114
    %p123 = scmp.eq.s32.totalorder %s15, 1
    %p124 = por %p122, %p123
    %p125 = scmp.ne.s32.totalorder %s114, %s115
    %p126 = scmp.eq.s32.totalorder %s15, 0
    %p127 = por %p125, %p126
    %p128 = scmp.ne.s32.totalorder %s114, %s115
    %p129 = scmp.eq.s32.totalorder %s16, 1
    %p130 = por %p128, %p129
    %p132 = scmp.ne.s32.totalorder %s115, %s131
    %p133 = scmp.eq.s32.totalorder %s16, 0
    %p134 = por %p132, %p133
    %p135 = scmp.le.s32.totalorder 1, %s10
    %p136 = scmp.lt.s32.totalorder %s10, 3
    %p137 = pnand %p135, %p136
    %p138 = pneg %p137
    // Predicated region
    $region9: #{conv_dropout_norm_relu.2} parent=5 // pred_check
      _
    $region10: #{conv_dropout_norm_relu.2} parent=5 // pred_check_branch
      %140 = sbr.rel (%p137) target = $region12
    $region11: #{conv_dropout_norm_relu.2} parent=5 // pred_region
      %s141 = ssub.s32 %s10, 1
      // Predicated region
      $region13: #{conv_dropout_norm_relu.2} parent=11 // pred_check
        %p142 = pneg %p71
      $region14: #{conv_dropout_norm_relu.2} parent=11 // pred_check_branch
        %144 = sbr.rel (%p142) target = $region16
      $region15: #{conv_dropout_norm_relu.2} parent=11 // pred_region
        _
      $region16: #{conv_dropout_norm_relu.2} parent=11 // pred_fallthru
        _
    $region12: #{conv_dropout_norm_relu.2} parent=5 // pred_fallthru
      _
    %p145 = scmp.lt.s32.totalorder %s10, 2
    // Predicated region
    $region17: #{conv_dropout_norm_relu.2} parent=5 // pred_check
      %p146 = pneg %p145
    $region18: #{conv_dropout_norm_relu.2} parent=5 // pred_check_branch
      %148 = sbr.rel (%p146) target = $region20
    $region19: #{conv_dropout_norm_relu.2} parent=5 // pred_region
      // Predicated region
      $region21: #{conv_dropout_norm_relu.2} parent=19 // pred_check
        %p149 = pneg %p44
      $region22: #{conv_dropout_norm_relu.2} parent=19 // pred_check_branch
        %151 = sbr.rel (%p149) target = $region24
      $region23: #{conv_dropout_norm_relu.2} parent=19 // pred_region
        %s152 = smul.u32 32, %s18
        %p153 = scmp.lt.s32.totalorder %s17, 1
        %s154 = scalar_select %p153, %s17, 1
        %p155 = scmp.lt.s32.totalorder %s152, 31
        %s156 = scalar_select %p155, %s152, 31
        %s157 = smul.addr %s154, 32
        %s158 = sadd.s32 %s156, %s157
        %s159 = smul.addr %s158, 4
        %s160 = scalar_lea.vmem %s0, %s159
        %s161 = smul.u32 32, %s18
      $region24: #{conv_dropout_norm_relu.2} parent=19 // pred_fallthru
        _
    $region20: #{conv_dropout_norm_relu.2} parent=5 // pred_fallthru
      _
    %p162 = scmp.le.s32.totalorder 1, %s10
    %p163 = scmp.lt.s32.totalorder %s10, 3
    %p164 = pnand %p162, %p163
    %p165 = pneg %p164
    // Predicated region
    $region25: #{conv_dropout_norm_relu.2} parent=5 // pred_check
      _
    $region26: #{conv_dropout_norm_relu.2} parent=5 // pred_check_branch
      %167 = sbr.rel (%p164) target = $region28
    $region27: #{conv_dropout_norm_relu.2} parent=5 // pred_region
      %s168 = ssub.s32 %s10, 1
      %s169 = smul.u32 32, %s20
      %p170 = scmp.lt.s32.totalorder %s19, 1
      %s171 = scalar_select %p170, %s19, 1
      %p172 = scmp.lt.s32.totalorder %s169, 31
      %s173 = scalar_select %p172, %s169, 31
      %s174 = smul.addr %s171, 32
      %s175 = sadd.s32 %s173, %s174
      %s176 = smul.addr %s175, 4
      %s177 = scalar_lea.vmem %s0, %s176
      %p178 = pneg %p50
      %p179 = pneg %p47
      %p180 = pneg %p71
      %p181 = pneg %p68
      %p182 = pneg %p99
      %p183 = pneg %p96
      %s184 = smul.u32 32, %s20
      %p185 = scmp.lt.s32.totalorder %s19, 1
      %s186 = scalar_select %p185, %s19, 1
      %p187 = scmp.lt.s32.totalorder %s184, 31
      %s188 = scalar_select %p187, %s184, 31
      %s189 = smul.addr %s186, 32
      %s190 = sadd.s32 %s188, %s189
      %s191 = smul.addr %s190, 4
      %s192 = scalar_lea.vmem %s2, %s191
      %p193 = pneg %p127
      %p194 = pneg %p124
      %p195 = scmp.lt.s32.totalorder %s19, 1
      %s196 = scalar_select %p195, %s19, 1
      %p197 = scmp.lt.s32.totalorder %s20, 0
      %s198 = scalar_select %p197, %s20, 0
      %s199 = sadd.s32 %s198, %s196
      %s200 = smul.addr %s199, 2
      %s201 = scalar_lea.vmem %s3, %s200
      %s202 = smul.u32 32, %s20
      %p203 = scmp.lt.s32.totalorder %s19, 1
      %s204 = scalar_select %p203, %s19, 1
      %p205 = scmp.lt.s32.totalorder %s202, 31
      %s206 = scalar_select %p205, %s202, 31
      %s207 = smul.addr %s204, 32
      %s208 = sadd.s32 %s206, %s207
      %s209 = smul.addr %s208, 4
      %s210 = scalar_lea.vmem %s0, %s209
      %s211 = smul.u32 32, %s20
      %s212 = smul.u32 32, %s20
      %p213 = scmp.lt.s32.totalorder %s19, 1
      %s214 = scalar_select %p213, %s19, 1
      %p215 = scmp.lt.s32.totalorder %s212, 31
      %s216 = scalar_select %p215, %s212, 31
      %s217 = smul.addr %s214, 32
      %s218 = sadd.s32 %s216, %s217
      %s219 = smul.addr %s218, 4
      %s220 = scalar_lea.vmem %s2, %s219
      %s221 = smul.u32 32, %s20
      %p222 = scmp.lt.s32.totalorder %s19, 1
      %s223 = scalar_select %p222, %s19, 1
      %p224 = scmp.lt.s32.totalorder %s20, 0
      %s225 = scalar_select %p224, %s20, 0
      %s226 = sadd.s32 %s225, %s223
      %s227 = smul.addr %s226, 2
      %s228 = scalar_lea.vmem %s3, %s227
      %v229 = vld [vmem:[%s210] sm:$0xf]
      %v230 = vld [vmem:[%s210 + $0x4] sm:$0xf]
      %v231 = vld [vmem:[%s210 + $0x8] sm:$0xf]
      %v232 = vld [vmem:[%s210 + $0xc] sm:$0xf]
      %v233 = vld [vmem:[%s210 + $0x10] sm:$0xf]
      %v234 = vld [vmem:[%s210 + $0x14] sm:$0xf]
      %v235 = vld [vmem:[%s210 + $0x18] sm:$0xf]
      %v236 = vld [vmem:[%s210 + $0x1c] sm:$0xf]
      %v237 = vld [vmem:[%s210 + $0x20] sm:$0xf]
      %v238 = vld [vmem:[%s210 + $0x24] sm:$0xf]
      %v239 = vld [vmem:[%s210 + $0x28] sm:$0xf]
      %v240 = vld [vmem:[%s210 + $0x2c] sm:$0xf]
      %v241 = vld [vmem:[%s210 + $0x30] sm:$0xf]
      %v242 = vld [vmem:[%s210 + $0x34] sm:$0xf]
      %v243 = vld [vmem:[%s210 + $0x38] sm:$0xf]
      %v244 = vld [vmem:[%s210 + $0x3c] sm:$0xf]
      %v245 = vld [vmem:[%s210 + $0x40] sm:$0xf]
      %v246 = vld [vmem:[%s210 + $0x44] sm:$0xf]
      %v247 = vld [vmem:[%s210 + $0x48] sm:$0xf]
      %v248 = vld [vmem:[%s210 + $0x4c] sm:$0xf]
      %v249 = vld [vmem:[%s210 + $0x50] sm:$0xf]
      %v250 = vld [vmem:[%s210 + $0x54] sm:$0xf]
      %v251 = vld [vmem:[%s210 + $0x58] sm:$0xf]
      %v252 = vld [vmem:[%s210 + $0x5c] sm:$0xf]
      %v253 = vld [vmem:[%s210 + $0x60] sm:$0xf]
      %v254 = vld [vmem:[%s210 + $0x64] sm:$0xf]
      %v255 = vld [vmem:[%s210 + $0x68] sm:$0xf]
      %v256 = vld [vmem:[%s210 + $0x6c] sm:$0xf]
      %v257 = vld [vmem:[%s210 + $0x70] sm:$0xf]
      %v258 = vld [vmem:[%s210 + $0x74] sm:$0xf]
      %v259 = vld [vmem:[%s210 + $0x78] sm:$0xf]
      %v260 = vld [vmem:[%s210 + $0x7c] sm:$0xf]
      %v261 = vld [vmem:[%s1] sm:$0xf]
      %v262 = vld [vmem:[%s1 + $0x4] sm:$0xf]
      %v263 = vld [vmem:[%s1 + $0x8] sm:$0xf]
      %v264 = vld [vmem:[%s1 + $0xc] sm:$0xf]
      %v265 = vld [vmem:[%s1 + $0x10] sm:$0xf]
      %v266 = vld [vmem:[%s1 + $0x14] sm:$0xf]
      %v267 = vld [vmem:[%s1 + $0x18] sm:$0xf]
      %v268 = vld [vmem:[%s1 + $0x1c] sm:$0xf]
      %v269 = vld [vmem:[%s1 + $0x20] sm:$0xf]
      %v270 = vld [vmem:[%s1 + $0x24] sm:$0xf]
      %v271 = vld [vmem:[%s1 + $0x28] sm:$0xf]
      %v272 = vld [vmem:[%s1 + $0x2c] sm:$0xf]
      %v273 = vld [vmem:[%s1 + $0x30] sm:$0xf]
      %v274 = vld [vmem:[%s1 + $0x34] sm:$0xf]
      %v275 = vld [vmem:[%s1 + $0x38] sm:$0xf]
      %v276 = vld [vmem:[%s1 + $0x3c] sm:$0xf]
      %v309 = vunpack.c.l.b16 %v229
      %v310 = vunpack.c.l.b16 %v230
      %v311 = vunpack.c.l.b16 %v231
      %v312 = vunpack.c.l.b16 %v232
      %v313 = vunpack.c.l.b16 %v233
      %v314 = vunpack.c.l.b16 %v234
      %v315 = vunpack.c.l.b16 %v235
      %v316 = vunpack.c.l.b16 %v236
      %v317 = vunpack.c.l.b16 %v237
      %v318 = vunpack.c.l.b16 %v238
      %v319 = vunpack.c.l.b16 %v239
      %v320 = vunpack.c.l.b16 %v240
      %v321 = vunpack.c.l.b16 %v241
      %v322 = vunpack.c.l.b16 %v242
      %v323 = vunpack.c.l.b16 %v243
      %v324 = vunpack.c.l.b16 %v244
      %v325 = vunpack.c.l.b16 %v245
      %v326 = vunpack.c.l.b16 %v246
      %v327 = vunpack.c.l.b16 %v247
      %v328 = vunpack.c.l.b16 %v248
      %v329 = vunpack.c.l.b16 %v249
      %v330 = vunpack.c.l.b16 %v250
      %v331 = vunpack.c.l.b16 %v251
      %v332 = vunpack.c.l.b16 %v252
      %v333 = vunpack.c.l.b16 %v253
      %v334 = vunpack.c.l.b16 %v254
      %v335 = vunpack.c.l.b16 %v255
      %v336 = vunpack.c.l.b16 %v256
      %v337 = vunpack.c.l.b16 %v257
      %v338 = vunpack.c.l.b16 %v258
      %v339 = vunpack.c.l.b16 %v259
      %v340 = vunpack.c.l.b16 %v260
      %v341 = vpack.c.b16 %v310, %v309
      %v342 = vpack.c.b16 %v312, %v311
      %v343 = vpack.c.b16 %v314, %v313
      %v344 = vpack.c.b16 %v316, %v315
      %v345 = vpack.c.b16 %v318, %v317
      %v346 = vpack.c.b16 %v320, %v319
      %v347 = vpack.c.b16 %v322, %v321
      %v348 = vpack.c.b16 %v324, %v323
      %v349 = vpack.c.b16 %v326, %v325
      %v350 = vpack.c.b16 %v328, %v327
      %v351 = vpack.c.b16 %v330, %v329
      %v352 = vpack.c.b16 %v332, %v331
      %v353 = vpack.c.b16 %v334, %v333
      %v354 = vpack.c.b16 %v336, %v335
      %v355 = vpack.c.b16 %v338, %v337
      %v356 = vpack.c.b16 %v340, %v339
      %v389 = vunpack.c.l.b16 %v261
      %v390 = vunpack.c.l.b16 %v262
      %v391 = vunpack.c.l.b16 %v263
      %v392 = vunpack.c.l.b16 %v264
      %v393 = vunpack.c.l.b16 %v265
      %v394 = vunpack.c.l.b16 %v266
      %v395 = vunpack.c.l.b16 %v267
      %v396 = vunpack.c.l.b16 %v268
      %v397 = vunpack.c.l.b16 %v269
      %v398 = vunpack.c.l.b16 %v270
      %v399 = vunpack.c.l.b16 %v271
      %v400 = vunpack.c.l.b16 %v272
      %v401 = vunpack.c.l.b16 %v273
      %v402 = vunpack.c.l.b16 %v274
      %v403 = vunpack.c.l.b16 %v275
      %v404 = vunpack.c.l.b16 %v276
      %v405 = vpack.c.b16 %v390, %v389
      %v406 = vpack.c.b16 %v392, %v391
      %v407 = vpack.c.b16 %v394, %v393
      %v408 = vpack.c.b16 %v396, %v395
      %v409 = vpack.c.b16 %v398, %v397
      %v410 = vpack.c.b16 %v400, %v399
      %v411 = vpack.c.b16 %v402, %v401
      %v412 = vpack.c.b16 %v404, %v403
      %421 = vmatpush.bf16.msra.mxu0 %v412
      %422 = vmatpush.bf16.msra.mxu0 %v411
      %423 = vmatpush.bf16.msra.mxu0 %v410
      %424 = vmatpush.bf16.msra.mxu0 %v409
      %425 = vmatpush.bf16.msra.mxu0 %v408
      %426 = vmatpush.bf16.msra.mxu0 %v407
      %427 = vmatpush.bf16.msra.mxu0 %v406
      %428 = vmatpush.bf16.msra.mxu0 %v405
      %429 = vmatmul.bf16.gmra.mxu0 %v341
      %v430 = vpop.f32.mrf.mxu0
      %v431 = vadd.f32 0.0, %v430
      %v432 = vpop.f32.mrf.mxu0
      %v433 = vadd.f32 0.0, %v432
      %434 = vmatmul.bf16.gmra.mxu0 %v342
      %v435 = vpop.f32.mrf.mxu0
      %v436 = vadd.f32 0.0, %v435
      %v437 = vpop.f32.mrf.mxu0
      %v438 = vadd.f32 0.0, %v437
      %439 = vmatmul.bf16.gmra.mxu0 %v343
      %v440 = vpop.f32.mrf.mxu0
      %v441 = vadd.f32 0.0, %v440
      %v442 = vpop.f32.mrf.mxu0
      %v443 = vadd.f32 0.0, %v442
      %444 = vmatmul.bf16.gmra.mxu0 %v344
      %v445 = vpop.f32.mrf.mxu0
      %v446 = vadd.f32 0.0, %v445
      %v447 = vpop.f32.mrf.mxu0
      %v448 = vadd.f32 0.0, %v447
      %449 = vmatmul.bf16.gmra.mxu0 %v345
      %v450 = vpop.f32.mrf.mxu0
      %v451 = vadd.f32 0.0, %v450
      %v452 = vpop.f32.mrf.mxu0
      %v453 = vadd.f32 0.0, %v452
      %454 = vmatmul.bf16.gmra.mxu0 %v346
      %v455 = vpop.f32.mrf.mxu0
      %v456 = vadd.f32 0.0, %v455
      %v457 = vpop.f32.mrf.mxu0
      %v458 = vadd.f32 0.0, %v457
      %459 = vmatmul.bf16.gmra.mxu0 %v347
      %v460 = vpop.f32.mrf.mxu0
      %v461 = vadd.f32 0.0, %v460
      %v462 = vpop.f32.mrf.mxu0
      %v463 = vadd.f32 0.0, %v462
      %464 = vmatmul.bf16.gmra.mxu0 %v348
      %v465 = vpop.f32.mrf.mxu0
      %v466 = vadd.f32 0.0, %v465
      %v467 = vpop.f32.mrf.mxu0
      %v468 = vadd.f32 0.0, %v467
      %469 = vmatmul.bf16.gmra.mxu0 %v349
      %v470 = vpop.f32.mrf.mxu0
      %v471 = vadd.f32 0.0, %v470
      %v472 = vpop.f32.mrf.mxu0
      %v473 = vadd.f32 0.0, %v472
      %474 = vmatmul.bf16.gmra.mxu0 %v350
      %v475 = vpop.f32.mrf.mxu0
      %v476 = vadd.f32 0.0, %v475
      %v477 = vpop.f32.mrf.mxu0
      %v478 = vadd.f32 0.0, %v477
      %479 = vmatmul.bf16.gmra.mxu0 %v351
      %v480 = vpop.f32.mrf.mxu0
      %v481 = vadd.f32 0.0, %v480
      %v482 = vpop.f32.mrf.mxu0
      %v483 = vadd.f32 0.0, %v482
      %484 = vmatmul.bf16.gmra.mxu0 %v352
      %v485 = vpop.f32.mrf.mxu0
      %v486 = vadd.f32 0.0, %v485
      %v487 = vpop.f32.mrf.mxu0
      %v488 = vadd.f32 0.0, %v487
      %489 = vmatmul.bf16.gmra.mxu0 %v353
      %v490 = vpop.f32.mrf.mxu0
      %v491 = vadd.f32 0.0, %v490
      %v492 = vpop.f32.mrf.mxu0
      %v493 = vadd.f32 0.0, %v492
      %494 = vmatmul.bf16.gmra.mxu0 %v354
      %v495 = vpop.f32.mrf.mxu0
      %v496 = vadd.f32 0.0, %v495
      %v497 = vpop.f32.mrf.mxu0
      %v498 = vadd.f32 0.0, %v497
      %499 = vmatmul.bf16.gmra.mxu0 %v355
      %v500 = vpop.f32.mrf.mxu0
      %v501 = vadd.f32 0.0, %v500
      %v502 = vpop.f32.mrf.mxu0
      %v503 = vadd.f32 0.0, %v502
      %504 = vmatmul.bf16.gmra.mxu0 %v356
      %v505 = vpop.f32.mrf.mxu0
      %v506 = vadd.f32 0.0, %v505
      %v507 = vpop.f32.mrf.mxu0
      %v508 = vadd.f32 0.0, %v507
      %509 = vdwg.mxu0
      %v510 = vpack.c.bf16 %v431, %v431
      %v511 = vpack.c.bf16 %v433, %v433
      %v512 = vpack.c.bf16 %v436, %v436
      %v513 = vpack.c.bf16 %v438, %v438
      %v514 = vpack.c.bf16 %v441, %v441
      %v515 = vpack.c.bf16 %v443, %v443
      %v516 = vpack.c.bf16 %v446, %v446
      %v517 = vpack.c.bf16 %v448, %v448
      %v518 = vpack.c.bf16 %v451, %v451
      %v519 = vpack.c.bf16 %v453, %v453
      %v520 = vpack.c.bf16 %v456, %v456
      %v521 = vpack.c.bf16 %v458, %v458
      %v522 = vpack.c.bf16 %v461, %v461
      %v523 = vpack.c.bf16 %v463, %v463
      %v524 = vpack.c.bf16 %v466, %v466
      %v525 = vpack.c.bf16 %v468, %v468
      %v526 = vpack.c.bf16 %v471, %v471
      %v527 = vpack.c.bf16 %v473, %v473
      %v528 = vpack.c.bf16 %v476, %v476
      %v529 = vpack.c.bf16 %v478, %v478
      %v530 = vpack.c.bf16 %v481, %v481
      %v531 = vpack.c.bf16 %v483, %v483
      %v532 = vpack.c.bf16 %v486, %v486
      %v533 = vpack.c.bf16 %v488, %v488
      %v534 = vpack.c.bf16 %v491, %v491
      %v535 = vpack.c.bf16 %v493, %v493
      %v536 = vpack.c.bf16 %v496, %v496
      %v537 = vpack.c.bf16 %v498, %v498
      %v538 = vpack.c.bf16 %v501, %v501
      %v539 = vpack.c.bf16 %v503, %v503
      %v540 = vpack.c.bf16 %v506, %v506
      %v541 = vpack.c.bf16 %v508, %v508
      %542 = vst [vmem:[%s220] sm:$0xf] %v510
      %543 = vst [vmem:[%s220 + $0x4] sm:$0xf] %v511
      %544 = vst [vmem:[%s220 + $0x8] sm:$0xf] %v512
      %545 = vst [vmem:[%s220 + $0xc] sm:$0xf] %v513
      %546 = vst [vmem:[%s220 + $0x10] sm:$0xf] %v514
      %547 = vst [vmem:[%s220 + $0x14] sm:$0xf] %v515
      %548 = vst [vmem:[%s220 + $0x18] sm:$0xf] %v516
      %549 = vst [vmem:[%s220 + $0x1c] sm:$0xf] %v517
      %550 = vst [vmem:[%s220 + $0x20] sm:$0xf] %v518
      %551 = vst [vmem:[%s220 + $0x24] sm:$0xf] %v519
      %552 = vst [vmem:[%s220 + $0x28] sm:$0xf] %v520
      %553 = vst [vmem:[%s220 + $0x2c] sm:$0xf] %v521
      %554 = vst [vmem:[%s220 + $0x30] sm:$0xf] %v522
      %555 = vst [vmem:[%s220 + $0x34] sm:$0xf] %v523
      %556 = vst [vmem:[%s220 + $0x38] sm:$0xf] %v524
      %557 = vst [vmem:[%s220 + $0x3c] sm:$0xf] %v525
      %558 = vst [vmem:[%s220 + $0x40] sm:$0xf] %v526
      %559 = vst [vmem:[%s220 + $0x44] sm:$0xf] %v527
      %560 = vst [vmem:[%s220 + $0x48] sm:$0xf] %v528
      %561 = vst [vmem:[%s220 + $0x4c] sm:$0xf] %v529
      %562 = vst [vmem:[%s220 + $0x50] sm:$0xf] %v530
      %563 = vst [vmem:[%s220 + $0x54] sm:$0xf] %v531
      %564 = vst [vmem:[%s220 + $0x58] sm:$0xf] %v532
      %565 = vst [vmem:[%s220 + $0x5c] sm:$0xf] %v533
      %566 = vst [vmem:[%s220 + $0x60] sm:$0xf] %v534
      %567 = vst [vmem:[%s220 + $0x64] sm:$0xf] %v535
      %568 = vst [vmem:[%s220 + $0x68] sm:$0xf] %v536
      %569 = vst [vmem:[%s220 + $0x6c] sm:$0xf] %v537
      %570 = vst [vmem:[%s220 + $0x70] sm:$0xf] %v538
      %571 = vst [vmem:[%s220 + $0x74] sm:$0xf] %v539
      %572 = vst [vmem:[%s220 + $0x78] sm:$0xf] %v540
      %573 = vst [vmem:[%s220 + $0x7c] sm:$0xf] %v541
      %v574 = vadd.f32 %v431, %v433
      %v575 = vadd.f32 %v574, %v436
      %v576 = vadd.f32 %v575, %v438
      %v577 = vadd.f32 %v576, %v441
      %v578 = vadd.f32 %v577, %v443
      %v579 = vadd.f32 %v578, %v446
      %v580 = vadd.f32 %v579, %v448
      %v581 = vadd.f32 %v580, %v451
      %v582 = vadd.f32 %v581, %v453
      %v583 = vadd.f32 %v582, %v456
      %v584 = vadd.f32 %v583, %v458
      %v585 = vadd.f32 %v584, %v461
      %v586 = vadd.f32 %v585, %v463
      %v587 = vadd.f32 %v586, %v466
      %v588 = vadd.f32 %v587, %v468
      %v589 = vadd.f32 %v588, %v471
      %v590 = vadd.f32 %v589, %v473
      %v591 = vadd.f32 %v590, %v476
      %v592 = vadd.f32 %v591, %v478
      %v593 = vadd.f32 %v592, %v481
      %v594 = vadd.f32 %v593, %v483
      %v595 = vadd.f32 %v594, %v486
      %v596 = vadd.f32 %v595, %v488
      %v597 = vadd.f32 %v596, %v491
      %v598 = vadd.f32 %v597, %v493
      %v599 = vadd.f32 %v598, %v496
      %v600 = vadd.f32 %v599, %v498
      %v601 = vadd.f32 %v600, %v501
      %v602 = vadd.f32 %v601, %v503
      %v603 = vadd.f32 %v602, %v506
      %v604 = vadd.f32 %v603, %v508
      %v605 = vrot.slane %v604, 4
      %v606 = vadd.f32 %v604, %v605
      %v607 = vrot.slane %v606, 2
      %v608 = vadd.f32 %v606, %v607
      %v609 = vrot.slane %v608, 1
      %v610 = vadd.f32 %v608, %v609
      %v611 = vmul.f32 %v431, %v431
      %v612 = vmul.f32 %v433, %v433
      %v613 = vmul.f32 %v436, %v436
      %v614 = vmul.f32 %v438, %v438
      %v615 = vmul.f32 %v441, %v441
      %v616 = vmul.f32 %v443, %v443
      %v617 = vmul.f32 %v446, %v446
      %v618 = vmul.f32 %v448, %v448
      %v619 = vmul.f32 %v451, %v451
      %v620 = vmul.f32 %v453, %v453
      %v621 = vmul.f32 %v456, %v456
      %v622 = vmul.f32 %v458, %v458
      %v623 = vmul.f32 %v461, %v461
      %v624 = vmul.f32 %v463, %v463
      %v625 = vmul.f32 %v466, %v466
      %v626 = vmul.f32 %v468, %v468
      %v627 = vmul.f32 %v471, %v471
      %v628 = vmul.f32 %v473, %v473
      %v629 = vmul.f32 %v476, %v476
      %v630 = vmul.f32 %v478, %v478
      %v631 = vmul.f32 %v481, %v481
      %v632 = vmul.f32 %v483, %v483
      %v633 = vmul.f32 %v486, %v486
      %v634 = vmul.f32 %v488, %v488
      %v635 = vmul.f32 %v491, %v491
      %v636 = vmul.f32 %v493, %v493
      %v637 = vmul.f32 %v496, %v496
      %v638 = vmul.f32 %v498, %v498
      %v639 = vmul.f32 %v501, %v501
      %v640 = vmul.f32 %v503, %v503
      %v641 = vmul.f32 %v506, %v506
      %v642 = vmul.f32 %v508, %v508
      %v643 = vadd.f32 %v611, %v612
      %v644 = vadd.f32 %v643, %v613
      %v645 = vadd.f32 %v644, %v614
      %v646 = vadd.f32 %v645, %v615
      %v647 = vadd.f32 %v646, %v616
      %v648 = vadd.f32 %v647, %v617
      %v649 = vadd.f32 %v648, %v618
      %v650 = vadd.f32 %v649, %v619
      %v651 = vadd.f32 %v650, %v620
      %v652 = vadd.f32 %v651, %v621
      %v653 = vadd.f32 %v652, %v622
      %v654 = vadd.f32 %v653, %v623
      %v655 = vadd.f32 %v654, %v624
      %v656 = vadd.f32 %v655, %v625
      %v657 = vadd.f32 %v656, %v626
      %v658 = vadd.f32 %v657, %v627
      %v659 = vadd.f32 %v658, %v628
      %v660 = vadd.f32 %v659, %v629
      %v661 = vadd.f32 %v660, %v630
      %v662 = vadd.f32 %v661, %v631
      %v663 = vadd.f32 %v662, %v632
      %v664 = vadd.f32 %v663, %v633
      %v665 = vadd.f32 %v664, %v634
      %v666 = vadd.f32 %v665, %v635
      %v667 = vadd.f32 %v666, %v636
      %v668 = vadd.f32 %v667, %v637
      %v669 = vadd.f32 %v668, %v638
      %v670 = vadd.f32 %v669, %v639
      %v671 = vadd.f32 %v670, %v640
      %v672 = vadd.f32 %v671, %v641
      %v673 = vadd.f32 %v672, %v642
      %v674 = vrot.slane %v673, 4
      %v675 = vadd.f32 %v673, %v674
      %v676 = vrot.slane %v675, 2
      %v677 = vadd.f32 %v675, %v676
      %v678 = vrot.slane %v677, 1
      %v679 = vadd.f32 %v677, %v678
      %vm680 = vcmask 1040384
      %v681 = vsel %vm680, %v610, %v679
      %682 = vst [vmem:[%s228] sm:$0x3] %v681
      %s683 = smul.u32 32, %s20
      %p684 = scmp.lt.s32.totalorder %s19, 1
      %s685 = scalar_select %p684, %s19, 1
      %p686 = scmp.lt.s32.totalorder %s683, 31
      %s687 = scalar_select %p686, %s683, 31
      %s688 = smul.addr %s685, 32
      %s689 = sadd.s32 %s687, %s688
      %s690 = smul.addr %s689, 4
      %s691 = scalar_lea.vmem %s2, %s690
      %p692 = scmp.lt.s32.totalorder %s19, 1
      %s693 = scalar_select %p692, %s19, 1
      %p694 = scmp.lt.s32.totalorder %s20, 0
      %s695 = scalar_select %p694, %s20, 0
      %s696 = sadd.s32 %s695, %s693
      %s697 = smul.addr %s696, 2
      %s698 = scalar_lea.vmem %s3, %s697
      // Predicated region
      $region29: #{conv_dropout_norm_relu.2} parent=27 // pred_check
        %p699 = pneg %p96
      $region30: #{conv_dropout_norm_relu.2} parent=27 // pred_check_branch
        %701 = sbr.rel (%p699) target = $region32
      $region31: #{conv_dropout_norm_relu.2} parent=27 // pred_region
        %s702 = smul.u32 32, %s20
      $region32: #{conv_dropout_norm_relu.2} parent=27 // pred_fallthru
        _
      // Predicated region
      $region33: #{conv_dropout_norm_relu.2} parent=27 // pred_check
        %p703 = pneg %p124
      $region34: #{conv_dropout_norm_relu.2} parent=27 // pred_check_branch
        %705 = sbr.rel (%p703) target = $region36
      $region35: #{conv_dropout_norm_relu.2} parent=27 // pred_region
        _
      $region36: #{conv_dropout_norm_relu.2} parent=27 // pred_fallthru
        _
    $region28: #{conv_dropout_norm_relu.2} parent=5 // pred_fallthru
      _
    %p706 = scmp.le.s32.totalorder 2, %s10
    // Predicated region
    $region37: #{conv_dropout_norm_relu.2} parent=5 // pred_check
      %p707 = pneg %p706
    $region38: #{conv_dropout_norm_relu.2} parent=5 // pred_check_branch
      %709 = sbr.rel (%p707) target = $region40
    $region39: #{conv_dropout_norm_relu.2} parent=5 // pred_region
      %s710 = ssub.s32 %s10, 2
      // Predicated region
      $region41: #{conv_dropout_norm_relu.2} parent=39 // pred_check
        %p711 = pneg %p102
      $region42: #{conv_dropout_norm_relu.2} parent=39 // pred_check_branch
        %713 = sbr.rel (%p711) target = $region44
      $region43: #{conv_dropout_norm_relu.2} parent=39 // pred_region
        %s714 = smul.u32 32, %s22
        %p715 = scmp.lt.s32.totalorder %s21, 1
        %s716 = scalar_select %p715, %s21, 1
        %p717 = scmp.lt.s32.totalorder %s714, 31
        %s718 = scalar_select %p717, %s714, 31
        %s719 = smul.addr %s716, 32
        %s720 = sadd.s32 %s718, %s719
        %s721 = smul.addr %s720, 4
        %s722 = scalar_lea.vmem %s2, %s721
      $region44: #{conv_dropout_norm_relu.2} parent=39 // pred_fallthru
        _
      // Predicated region
      $region45: #{conv_dropout_norm_relu.2} parent=39 // pred_check
        %p723 = pneg %p130
      $region46: #{conv_dropout_norm_relu.2} parent=39 // pred_check_branch
        %725 = sbr.rel (%p723) target = $region48
      $region47: #{conv_dropout_norm_relu.2} parent=39 // pred_region
        %p726 = scmp.lt.s32.totalorder %s21, 1
        %s727 = scalar_select %p726, %s21, 1
        %p728 = scmp.lt.s32.totalorder %s22, 0
        %s729 = scalar_select %p728, %s22, 0
        %s730 = sadd.s32 %s729, %s727
        %s731 = smul.addr %s730, 2
        %s732 = scalar_lea.vmem %s3, %s731
      $region48: #{conv_dropout_norm_relu.2} parent=39 // pred_fallthru
        _
    $region40: #{conv_dropout_norm_relu.2} parent=5 // pred_fallthru
      _
  $region6: #{conv_dropout_norm_relu.2} parent=0 // loop_footer
    %s14 = sadd.s32 1, %s10
  $region7: #{conv_dropout_norm_relu.2} parent=0 // loop_footer_branch
    %9 = sbr.rel target = $region3
  $region8: #{conv_dropout_norm_relu.2} parent=0 // loop_exit
    _

</llo_original>
